<compile_context>
chip_gen: v5e
topology: v5e:2x2
jax: 0.10.0
libtpu: 0.0.40
codegen_flags: <defaults>
</compile_context>

<pallas_src>
import jax
import jax.numpy as jnp
from jax.experimental import pallas as pl
from jax.experimental.pallas import tpu as pltpu


def _round_up(x, m):
    return ((x + m - 1) // m) * m


# ----------------------------------------------------------------------------
# Fused Pallas kernel: the whole GNBlock stack, one batch tile per grid step.
# ----------------------------------------------------------------------------
def _make_fused_gnn_kernel(num_blocks, batch_tile, n_nodes, node_init_dim,
                           hidden_dim, out_dim, out_dtype):
    """Builds the fused kernel. The per-block Python loop is unrolled at trace
    time; intermediate node features stay resident in VMEM/vregs. (TB*N is
    capped at ~512 rows by the wrapper to keep vreg pressure sane.)"""
    TB, N, D0, H, O = batch_tile, n_nodes, node_init_dim, hidden_dim, out_dim
    HO = H + O

    def kernel(*refs):
        # refs layout:
        #   0            : noise  (TB, N*D0)   lane-dense
        #   1            : mask   (TB, N)      float32
        #   2 + 3*l ...  : (w_fused (D, H+O) bf16, w_agg (H, O) bf16,
        #                   cb (TB, H+O) f32)  for block l
        #   -1           : out    (TB, N*O)    lane-dense
        noise_ref, mask_ref = refs[0], refs[1]
        out_ref = refs[-1]

        m2 = mask_ref[...]                                   # (TB, N) f32
        # valid-sender count per graph (adjmat is all-ones => identical for
        # every receiver). Exact divide: it happens once per graph.
        cnt = jnp.sum(m2, axis=1, keepdims=True)             # (TB, 1)
        inv_cnt = 1.0 / jnp.maximum(cnt, 1.0)                # (TB, 1)
        m3 = m2[:, :, None]                                  # (TB, N, 1)

        # _create_init_graph: gaussian noise * mask (masking fused here).
        n3 = noise_ref[...].reshape(TB, N, D0) * m3          # (TB, N, D0) f32

        for l in range(num_blocks):                          # unrolled
            w_ref, wagg_ref, cb_ref = refs[2 + 3 * l: 2 + 3 * (l + 1)]

            d_in = n3.shape[-1]
            # Flatten batch tile so the MXU sees M = TB*N rows; bf16 inputs,
            # f32 accumulation. One fused (D, H+O) matmul per block.
            n2 = n3.reshape(TB * N, d_in).astype(jnp.bfloat16)
            h = jnp.dot(n2, w_ref[...],
                        preferred_element_type=jnp.float32)  # (TB*N, H+O) f32
            h = h.reshape(TB, N, HO) + cb_ref[...][:, None, :]

            # --- message half: relu, zero masked senders ---
            msg = jnp.maximum(h[..., :H], 0.0) * m3          # (TB, N, H)

            # --- aggregation: all-ones adjacency => masked mean over senders,
            #     identical for every receiver -> one (TB, H) row per graph ---
            agg = jnp.sum(msg, axis=1) * inv_cnt              # (TB, H)
            agg_prj = jnp.dot(agg.astype(jnp.bfloat16), wagg_ref[...],
                              preferred_element_type=jnp.float32)   # (TB, O)

            # --- node-update half: add projected aggregate, relu, re-mask ---
            upd = h[..., H:] + agg_prj[:, None, :]            # (TB, N, O)
            n3 = jnp.maximum(upd, 0.0) * m3

        # Lane-dense store: (TB, N*O) slab, N*O >= 128 lanes.
        out_ref[...] = n3.reshape(TB, N * O).astype(out_dtype)

    return kernel


def fused_gnn(noise_flat, mask2d, fused_ws, agg_ws, cbs, *, n_nodes,
              node_init_dim, hidden_dim, out_dim, target_rows=512):
    """Run the whole GNBlock stack in one pallas_call, gridded over batch tiles.

    noise_flat: (B, N*D0) f32       lane-dense gaussian noise
    mask2d:     (B, N)    f32       node validity mask
    fused_ws:   list of (D, H+O)    bf16 per block  ([w_msg | w_node_n])
    agg_ws:     list of (H, O)      bf16 per block
    cbs:        list of (B, H+O)    f32 per block   ([ctxt@Wc_msg+b | ctxt@Wc_node+b])
    """
    B = noise_flat.shape[0]
    N = n_nodes
    num_blocks = len(fused_ws)
    HO = hidden_dim + out_dim

    # Batch tile: multiple of 8 sublanes, ~target_rows node rows per grid step.
    # B is padded to a multiple of TB (padded graphs have mask == 0).
    tb = _round_up(max(1, -(-target_rows // N)), 8)
    TB = min(tb, _round_up(B, 8))
    B_pad = _round_up(B, TB)
    grid = (B_pad // TB,)

    def pad_b(x):
        extra = B_pad - x.shape[0]
        if extra == 0:
            return x
        return jnp.pad(x, ((0, extra),) + ((0, 0),) * (x.ndim - 1))

    noise_flat = pad_b(noise_flat)
    mask2d = pad_b(mask2d)
    cbs = [pad_b(cb) for cb in cbs]

    flat_inputs = [noise_flat, mask2d]
    in_specs = [
        pl.BlockSpec((TB, N * node_init_dim), lambda b: (b, 0)),
        pl.BlockSpec((TB, N), lambda b: (b, 0)),
    ]
    for wf, wa, cb in zip(fused_ws, agg_ws, cbs):
        flat_inputs += [wf, wa, cb]
        in_specs += [
            pl.BlockSpec(wf.shape, lambda b: (0, 0)),   # grid-invariant weights
            pl.BlockSpec(wa.shape, lambda b: (0, 0)),
            pl.BlockSpec((TB, HO), lambda b: (b, 0)),   # 2-D per-graph bias rows
        ]

    kernel = _make_fused_gnn_kernel(num_blocks, TB, N, node_init_dim,
                                    hidden_dim, out_dim, jnp.float32)

    out = pl.pallas_call(
        kernel,
        out_shape=jax.ShapeDtypeStruct((B_pad, N * out_dim), jnp.float32),
        grid=grid,
        in_specs=in_specs,
        out_specs=pl.BlockSpec((TB, N * out_dim), lambda b: (b, 0)),
        compiler_params=pltpu.CompilerParams(
            dimension_semantics=("parallel",),
            # Footprint per step is well under 1 MiB at these dims; this just
            # leaves headroom if TB is scaled (48 MiB is safe on v5e/v6e/v7x).
            vmem_limit_bytes=48 * 1024 * 1024,
        ),
    )(*flat_inputs)

    return out[:B].reshape(B, N, out_dim)


# ----------------------------------------------------------------------------
# Parameter construction (deterministic, in-script)
# ----------------------------------------------------------------------------
def _dense_init(key, shape):
    fan_in = shape[0]
    return (jax.random.normal(key, shape, dtype=jnp.float32)
            / jnp.sqrt(jnp.float32(fan_in)))


def make_gn_block_params(key, node_dim, ctxt_dim, hidden_dim, out_dim):
    ks = jax.random.split(key, 5)
    return {
        "w_msg": _dense_init(ks[0], (node_dim, hidden_dim)),
        "wc_msg": _dense_init(ks[1], (ctxt_dim, hidden_dim)),
        "b_msg": jnp.zeros((1, hidden_dim), jnp.float32),
        "w_node_n": _dense_init(ks[2], (node_dim, out_dim)),
        "w_node_a": _dense_init(ks[3], (hidden_dim, out_dim)),
        "w_node_c": _dense_init(ks[4], (ctxt_dim, out_dim)),
        "b_node": jnp.zeros((1, out_dim), jnp.float32),
    }


# ----------------------------------------------------------------------------
# GraphVectorGenerator in JAX (glue) + single fused Pallas kernel (hot path)
# ----------------------------------------------------------------------------
class GraphVectorGenerator:
    def __init__(self, inpt_dim, ctxt_dim=0, node_init_dim=4,
                 hidden_dim=32, out_node_dim=32, num_blocks=2,
                 key=jax.random.PRNGKey(42)):
        self.inpt_dim = inpt_dim
        self.ctxt_dim = ctxt_dim
        self.node_init_dim = node_init_dim
        self.hidden_dim = hidden_dim
        self.out_node_dim = out_node_dim
        gnn_ctxt_dim = inpt_dim + ctxt_dim   # ctxt fed to GNN = smart_cat([inputs, ctxt])

        self.block_params = []
        cur_node_dim = node_init_dim
        keys = jax.random.split(key, num_blocks)
        for i in range(num_blocks):
            self.block_params.append(
                make_gn_block_params(keys[i], cur_node_dim, gnn_ctxt_dim,
                                     hidden_dim, out_node_dim))
            cur_node_dim = out_node_dim

        # Pre-fuse per-node weights once: one (D, H+O) bf16 matmul per block.
        self.fused_node_w = [
            jnp.concatenate([p["w_msg"], p["w_node_n"]], axis=1).astype(jnp.bfloat16)
            for p in self.block_params]
        self.agg_w = [p["w_node_a"].astype(jnp.bfloat16) for p in self.block_params]

        # GNN outp_dim = [edge, node, glob]; edges/globals stay empty here.
        self.outp_dim = [0, out_node_dim, 0]

    def __call__(self, inputs, target_mask, ctxt=None,
                 noise_key=jax.random.PRNGKey(1)):
        B = inputs.shape[0]
        N = target_mask.shape[-1]
        D0, H, O = self.node_init_dim, self.hidden_dim, self.out_node_dim

        # _create_init_graph: gaussian noise nodes (mask multiply fused in-kernel),
        # fully-connected adjmat, empty edges / globals.
        noise = jax.random.normal(noise_key, (B, N * D0), dtype=jnp.float32)
        mask2d = target_mask.astype(jnp.float32)                     # (B, N)

        # smart_cat([inputs, ctxt])
        gnn_ctxt = inputs if ctxt is None else jnp.concatenate(
            [inputs, ctxt], axis=-1)

        # Hoist per-graph context projections out of the per-node hot path:
        # fold ctxt @ Wc + b into one per-graph (H+O) bias row per block.
        cbs = []
        for p in self.block_params:
            cb_msg = gnn_ctxt @ p["wc_msg"] + p["b_msg"]             # (B, H)
            cb_node = gnn_ctxt @ p["w_node_c"] + p["b_node"]         # (B, O)
            cbs.append(jnp.concatenate([cb_msg, cb_node], axis=-1))  # (B, H+O)

        nodes = fused_gnn(noise, mask2d, self.fused_node_w, self.agg_w, cbs,
                          n_nodes=N, node_init_dim=D0, hidden_dim=H, out_dim=O)

        graph = {
            # edge shape (N*N, 0) matches the reference _create_init_graph.
            "edges": jnp.zeros((N * N, 0), jnp.float32),
            "nodes": nodes,
            "globs": jnp.zeros((B, 0), jnp.float32),
            "adjmat": jnp.ones((B, N, N), jnp.bool_),
            "mask": target_mask,
        }
        return graph


# ----------------------------------------------------------------------------
if __name__ == "__main__":
    key = jax.random.PRNGKey(0)
    k_in, k_param, k_noise = jax.random.split(key, 3)

    B, N = 2, 8           # batch, number of generated nodes
    inpt_dim = 16         # input vector size
    node_init_dim = 4

    inputs = jax.random.normal(k_in, (B, inpt_dim), dtype=jnp.float32)
    target_mask = jnp.array(
        [[1, 1, 1, 1, 1, 1, 0, 0],
         [1, 1, 1, 1, 1, 1, 1, 1]], dtype=jnp.bool_)

    gen = GraphVectorGenerator(inpt_dim=inpt_dim, ctxt_dim=0,
                               node_init_dim=node_init_dim,
                               hidden_dim=32, out_node_dim=32,
                               num_blocks=2, key=k_param)

    graph = gen(inputs, target_mask, noise_key=k_noise)
    jax.block_until_ready(graph["nodes"])

    assert graph["nodes"].shape == (B, N, 32)
    assert graph["adjmat"].shape == (B, N, N)
    assert graph["mask"].shape == (B, N)
    # masked-off nodes must be exactly zero
    assert float(jnp.abs(graph["nodes"][0, 6:]).max()) == 0.0

    print("KERNEL_OK")
</pallas_src>

<mosaic_0001>
module attributes {stable_mosaic.version = 11 : i64} {
  func.func @kernel(%arg0: i32, %arg1: memref<8x32xf32, #tpu.memory_space<vmem>>, %arg2: memref<8x8xf32, #tpu.memory_space<vmem>>, %arg3: memref<4x64xbf16, #tpu.memory_space<vmem>>, %arg4: memref<32x32xbf16, #tpu.memory_space<vmem>>, %arg5: memref<8x64xf32, #tpu.memory_space<vmem>>, %arg6: memref<32x64xbf16, #tpu.memory_space<vmem>>, %arg7: memref<32x32xbf16, #tpu.memory_space<vmem>>, %arg8: memref<8x64xf32, #tpu.memory_space<vmem>>, %arg9: memref<8x256xf32, #tpu.memory_space<vmem>>) attributes {dimension_semantics = [#tpu.dimension_semantics<parallel>], iteration_bounds = array<i64: 1>, scalar_prefetch = 0 : i64, scratch_operands = 0 : i64, tpu.core_type = #tpu.core_type<tc>, window_params = [{transform_indices = @transform_0, window_bounds = array<i64: 8, 32>}, {transform_indices = @transform_1, window_bounds = array<i64: 8, 8>}, {pipeline_mode = #tpu.pipeline_mode<synchronous>, transform_indices = @transform_2, window_bounds = array<i64: 4, 64>}, {pipeline_mode = #tpu.pipeline_mode<synchronous>, transform_indices = @transform_3, window_bounds = array<i64: 32, 32>}, {transform_indices = @transform_4, window_bounds = array<i64: 8, 64>}, {pipeline_mode = #tpu.pipeline_mode<synchronous>, transform_indices = @transform_5, window_bounds = array<i64: 32, 64>}, {pipeline_mode = #tpu.pipeline_mode<synchronous>, transform_indices = @transform_6, window_bounds = array<i64: 32, 32>}, {transform_indices = @transform_7, window_bounds = array<i64: 8, 64>}, {transform_indices = @transform_8, window_bounds = array<i64: 8, 256>}]} {
    %c0 = arith.constant 0 : index
    %c0_0 = arith.constant 0 : index
    %0 = vector.load %arg2[%c0, %c0_0] : memref<8x8xf32, #tpu.memory_space<vmem>>, vector<8x8xf32>
    %cst = arith.constant dense<0.000000e+00> : vector<8xf32>
    %1 = vector.multi_reduction <add>, %0, %cst [1] : vector<8x8xf32> to vector<8xf32>
    %2 = vector.shape_cast %1 : vector<8xf32> to vector<8x1xf32>
    %cst_1 = arith.constant 1.000000e+00 : f32
    %3 = vector.broadcast %cst_1 : f32 to vector<8x1xf32>
    %4 = arith.maximumf %2, %3 : vector<8x1xf32>
    %cst_2 = arith.constant 1.000000e+00 : f32
    %5 = vector.broadcast %cst_2 : f32 to vector<8x1xf32>
    %6 = arith.divf %5, %4 : vector<8x1xf32>
    %7 = vector.shape_cast %0 : vector<8x8xf32> to vector<8x8x1xf32>
    %c0_3 = arith.constant 0 : index
    %c0_4 = arith.constant 0 : index
    %8 = vector.load %arg1[%c0_3, %c0_4] : memref<8x32xf32, #tpu.memory_space<vmem>>, vector<8x32xf32>
    %9 = vector.shape_cast %8 : vector<8x32xf32> to vector<8x8x4xf32>
    %10 = vector.broadcast %7 : vector<8x8x1xf32> to vector<8x8x4xf32>
    %11 = arith.mulf %9, %10 : vector<8x8x4xf32>
    %12 = vector.shape_cast %11 : vector<8x8x4xf32> to vector<64x4xf32>
    %13 = arith.truncf %12 : vector<64x4xf32> to vector<64x4xbf16>
    %c0_5 = arith.constant 0 : index
    %c0_6 = arith.constant 0 : index
    %14 = vector.load %arg3[%c0_5, %c0_6] : memref<4x64xbf16, #tpu.memory_space<vmem>>, vector<4x64xbf16>
    %cst_7 = arith.constant dense<0.000000e+00> : vector<64x64xf32>
    %15 = tpu.matmul %13, %14, %cst_7 {dimension_numbers = #tpu.dot_dimension_numbers<[1], [0], [0], [1], [0, 0, 1, 1], [], []>} : vector<64x4xbf16>, vector<4x64xbf16>, vector<64x64xf32> -> vector<64x64xf32>
    %16 = vector.shape_cast %15 : vector<64x64xf32> to vector<8x8x64xf32>
    %c0_8 = arith.constant 0 : index
    %c0_9 = arith.constant 0 : index
    %17 = vector.load %arg5[%c0_8, %c0_9] : memref<8x64xf32, #tpu.memory_space<vmem>>, vector<8x64xf32>
    %18 = vector.shape_cast %17 : vector<8x64xf32> to vector<8x1x64xf32>
    %19 = vector.broadcast %18 : vector<8x1x64xf32> to vector<8x8x64xf32>
    %20 = arith.addf %16, %19 : vector<8x8x64xf32>
    %21 = vector.extract_strided_slice %20 {offsets = [0, 0, 0], sizes = [8, 8, 32], strides = [1, 1, 1]} : vector<8x8x64xf32> to vector<8x8x32xf32>
    %cst_10 = arith.constant 0.000000e+00 : f32
    %22 = vector.broadcast %cst_10 : f32 to vector<8x8x32xf32>
    %23 = arith.maximumf %21, %22 : vector<8x8x32xf32>
    %24 = vector.broadcast %7 : vector<8x8x1xf32> to vector<8x8x32xf32>
    %25 = arith.mulf %23, %24 : vector<8x8x32xf32>
    %cst_11 = arith.constant dense<0.000000e+00> : vector<8x32xf32>
    %26 = vector.multi_reduction <add>, %25, %cst_11 [1] : vector<8x8x32xf32> to vector<8x32xf32>
    %27 = vector.broadcast %6 : vector<8x1xf32> to vector<8x32xf32>
    %28 = arith.mulf %26, %27 : vector<8x32xf32>
    %29 = arith.truncf %28 : vector<8x32xf32> to vector<8x32xbf16>
    %c0_12 = arith.constant 0 : index
    %c0_13 = arith.constant 0 : index
    %30 = vector.load %arg4[%c0_12, %c0_13] : memref<32x32xbf16, #tpu.memory_space<vmem>>, vector<32x32xbf16>
    %cst_14 = arith.constant dense<0.000000e+00> : vector<8x32xf32>
    %31 = tpu.matmul %29, %30, %cst_14 {dimension_numbers = #tpu.dot_dimension_numbers<[1], [0], [0], [1], [0, 0, 1, 1], [], []>} : vector<8x32xbf16>, vector<32x32xbf16>, vector<8x32xf32> -> vector<8x32xf32>
    %32 = vector.extract_strided_slice %20 {offsets = [0, 0, 32], sizes = [8, 8, 32], strides = [1, 1, 1]} : vector<8x8x64xf32> to vector<8x8x32xf32>
    %33 = vector.shape_cast %31 : vector<8x32xf32> to vector<8x1x32xf32>
    %34 = vector.broadcast %33 : vector<8x1x32xf32> to vector<8x8x32xf32>
    %35 = arith.addf %32, %34 : vector<8x8x32xf32>
    %cst_15 = arith.constant 0.000000e+00 : f32
    %36 = vector.broadcast %cst_15 : f32 to vector<8x8x32xf32>
    %37 = arith.maximumf %35, %36 : vector<8x8x32xf32>
    %38 = vector.broadcast %7 : vector<8x8x1xf32> to vector<8x8x32xf32>
    %39 = arith.mulf %37, %38 : vector<8x8x32xf32>
    %40 = vector.shape_cast %39 : vector<8x8x32xf32> to vector<64x32xf32>
    %41 = arith.truncf %40 : vector<64x32xf32> to vector<64x32xbf16>
    %c0_16 = arith.constant 0 : index
    %c0_17 = arith.constant 0 : index
    %42 = vector.load %arg6[%c0_16, %c0_17] : memref<32x64xbf16, #tpu.memory_space<vmem>>, vector<32x64xbf16>
    %cst_18 = arith.constant dense<0.000000e+00> : vector<64x64xf32>
    %43 = tpu.matmul %41, %42, %cst_18 {dimension_numbers = #tpu.dot_dimension_numbers<[1], [0], [0], [1], [0, 0, 1, 1], [], []>} : vector<64x32xbf16>, vector<32x64xbf16>, vector<64x64xf32> -> vector<64x64xf32>
    %44 = vector.shape_cast %43 : vector<64x64xf32> to vector<8x8x64xf32>
    %c0_19 = arith.constant 0 : index
    %c0_20 = arith.constant 0 : index
    %45 = vector.load %arg8[%c0_19, %c0_20] : memref<8x64xf32, #tpu.memory_space<vmem>>, vector<8x64xf32>
    %46 = vector.shape_cast %45 : vector<8x64xf32> to vector<8x1x64xf32>
    %47 = vector.broadcast %46 : vector<8x1x64xf32> to vector<8x8x64xf32>
    %48 = arith.addf %44, %47 : vector<8x8x64xf32>
    %49 = vector.extract_strided_slice %48 {offsets = [0, 0, 0], sizes = [8, 8, 32], strides = [1, 1, 1]} : vector<8x8x64xf32> to vector<8x8x32xf32>
    %cst_21 = arith.constant 0.000000e+00 : f32
    %50 = vector.broadcast %cst_21 : f32 to vector<8x8x32xf32>
    %51 = arith.maximumf %49, %50 : vector<8x8x32xf32>
    %52 = vector.broadcast %7 : vector<8x8x1xf32> to vector<8x8x32xf32>
    %53 = arith.mulf %51, %52 : vector<8x8x32xf32>
    %cst_22 = arith.constant dense<0.000000e+00> : vector<8x32xf32>
    %54 = vector.multi_reduction <add>, %53, %cst_22 [1] : vector<8x8x32xf32> to vector<8x32xf32>
    %55 = vector.broadcast %6 : vector<8x1xf32> to vector<8x32xf32>
    %56 = arith.mulf %54, %55 : vector<8x32xf32>
    %57 = arith.truncf %56 : vector<8x32xf32> to vector<8x32xbf16>
    %c0_23 = arith.constant 0 : index
    %c0_24 = arith.constant 0 : index
    %58 = vector.load %arg7[%c0_23, %c0_24] : memref<32x32xbf16, #tpu.memory_space<vmem>>, vector<32x32xbf16>
    %cst_25 = arith.constant dense<0.000000e+00> : vector<8x32xf32>
    %59 = tpu.matmul %57, %58, %cst_25 {dimension_numbers = #tpu.dot_dimension_numbers<[1], [0], [0], [1], [0, 0, 1, 1], [], []>} : vector<8x32xbf16>, vector<32x32xbf16>, vector<8x32xf32> -> vector<8x32xf32>
    %60 = vector.extract_strided_slice %48 {offsets = [0, 0, 32], sizes = [8, 8, 32], strides = [1, 1, 1]} : vector<8x8x64xf32> to vector<8x8x32xf32>
    %61 = vector.shape_cast %59 : vector<8x32xf32> to vector<8x1x32xf32>
    %62 = vector.broadcast %61 : vector<8x1x32xf32> to vector<8x8x32xf32>
    %63 = arith.addf %60, %62 : vector<8x8x32xf32>
    %cst_26 = arith.constant 0.000000e+00 : f32
    %64 = vector.broadcast %cst_26 : f32 to vector<8x8x32xf32>
    %65 = arith.maximumf %63, %64 : vector<8x8x32xf32>
    %66 = vector.broadcast %7 : vector<8x8x1xf32> to vector<8x8x32xf32>
    %67 = arith.mulf %65, %66 : vector<8x8x32xf32>
    %68 = vector.shape_cast %67 : vector<8x8x32xf32> to vector<8x256xf32>
    %c0_27 = arith.constant 0 : index
    %c0_28 = arith.constant 0 : index
    %69 = vector.load %arg9[%c0_27, %c0_28] : memref<8x256xf32, #tpu.memory_space<vmem>>, vector<8x256xf32>
    tpu.vector_store %arg9[%c0_27, %c0_28], %68 {strides = array<i32>} : memref<8x256xf32, #tpu.memory_space<vmem>>, vector<8x256xf32>,
    return
  }
  func.func @transform_0(%arg0: i32) -> (i32, i32) {
    %c0_i32 = arith.constant 0 : i32
    %c0_i32_0 = arith.constant 0 : i32
    return %arg0, %c0_i32 : i32, i32
  }
  func.func @transform_1(%arg0: i32) -> (i32, i32) {
    %c0_i32 = arith.constant 0 : i32
    %c0_i32_0 = arith.constant 0 : i32
    return %arg0, %c0_i32 : i32, i32
  }
  func.func @transform_2(%arg0: i32) -> (i32, i32) {
    %c0_i32 = arith.constant 0 : i32
    %c0_i32_0 = arith.constant 0 : i32
    %c0_i32_1 = arith.constant 0 : i32
    return %c0_i32, %c0_i32_0 : i32, i32
  }
  func.func @transform_3(%arg0: i32) -> (i32, i32) {
    %c0_i32 = arith.constant 0 : i32
    %c0_i32_0 = arith.constant 0 : i32
    %c0_i32_1 = arith.constant 0 : i32
    return %c0_i32, %c0_i32_0 : i32, i32
  }
  func.func @transform_4(%arg0: i32) -> (i32, i32) {
    %c0_i32 = arith.constant 0 : i32
    %c0_i32_0 = arith.constant 0 : i32
    return %arg0, %c0_i32 : i32, i32
  }
  func.func @transform_5(%arg0: i32) -> (i32, i32) {
    %c0_i32 = arith.constant 0 : i32
    %c0_i32_0 = arith.constant 0 : i32
    %c0_i32_1 = arith.constant 0 : i32
    return %c0_i32, %c0_i32_0 : i32, i32
  }
  func.func @transform_6(%arg0: i32) -> (i32, i32) {
    %c0_i32 = arith.constant 0 : i32
    %c0_i32_0 = arith.constant 0 : i32
    %c0_i32_1 = arith.constant 0 : i32
    return %c0_i32, %c0_i32_0 : i32, i32
  }
  func.func @transform_7(%arg0: i32) -> (i32, i32) {
    %c0_i32 = arith.constant 0 : i32
    %c0_i32_0 = arith.constant 0 : i32
    return %arg0, %c0_i32 : i32, i32
  }
  func.func @transform_8(%arg0: i32) -> (i32, i32) {
    %c0_i32 = arith.constant 0 : i32
    %c0_i32_0 = arith.constant 0 : i32
    return %arg0, %c0_i32 : i32, i32
  }
}

</mosaic_0001>

<llo_original>
// kernel: tpu_custom_call.1
$region0: #{tpu_custom_call.1}
  #allocation0 [shape = 'u32[]', space=smem, size = 0x4, offset = 0x4, fixed_abs, tag = 'smem constant byte address 0x4 - core index']
  #allocation1 [shape = 'u32[72,128]{1,0:T(1,128)}', space=vmem, size = 0x9000, scoped, tag = 'internal scratch']
  %s0 = inlined_call_operand.hbm [shape: f32[8,32], index: 0, kind: input, shape index: {}]
  %s1 = inlined_call_operand.hbm [shape: f32[8,8], index: 1, kind: input, shape index: {}]
  %s2 = inlined_call_operand.hbm [shape: bf16[4,64], index: 2, kind: input, shape index: {}]
  %s3 = inlined_call_operand.hbm [shape: bf16[32,32], index: 3, kind: input, shape index: {}]
  %s4 = inlined_call_operand.hbm [shape: f32[8,64], index: 4, kind: input, shape index: {}]
  %s5 = inlined_call_operand.hbm [shape: bf16[32,64], index: 5, kind: input, shape index: {}]
  %s6 = inlined_call_operand.hbm [shape: bf16[32,32], index: 6, kind: input, shape index: {}]
  %s7 = inlined_call_operand.hbm [shape: f32[8,64], index: 7, kind: input, shape index: {}]
  %s8 = inlined_call_operand.hbm [shape: f32[8,256], index: 8, kind: output, shape index: {}]
  %s9 = sld [smem:[#allocation0]]
  $region74: #{tpu_custom_call.1} parent=0
    _
  %s11 = ssub.s32 1, %s9
  %s12 = scalar_select 0, %s11, %s9
  $region1: #{tpu_custom_call.1} parent=0
    #allocation2 [shape = 'u8[4096]{0}', space=vmem, size = 0x1000, scoped, tag = 'input window, operand 0, single buffered']
    #allocation3 [shape = 's32[1]{0}', space=sflag, size = 0x4, scoped, tag = 'scoped memory for tpu_custom_call.1']
    #allocation4 [shape = 's32[1]{0}', space=sflag, size = 0x4, scoped, tag = 'scoped memory for tpu_custom_call.1']
    #allocation5 [shape = 'u8[4096]{0}', space=vmem, size = 0x1000, scoped, tag = 'input window, operand 1, single buffered']
    #allocation6 [shape = 's32[1]{0}', space=sflag, size = 0x4, scoped, tag = 'scoped memory for tpu_custom_call.1']
    #allocation7 [shape = 'u8[1024]{0}', space=vmem, size = 0x400, scoped, tag = 'input window, operand 2, single buffered']
    #allocation8 [shape = 'u8[8192]{0}', space=vmem, size = 0x2000, scoped, tag = 'input window, operand 3, single buffered']
    #allocation9 [shape = 's32[1]{0}', space=sflag, size = 0x4, scoped, tag = 'scoped memory for tpu_custom_call.1']
    #allocation10 [shape = 'u8[4096]{0}', space=vmem, size = 0x1000, scoped, tag = 'input window, operand 4, single buffered']
    #allocation11 [shape = 'u8[8192]{0}', space=vmem, size = 0x2000, scoped, tag = 'input window, operand 5, single buffered']
    #allocation12 [shape = 's32[1]{0}', space=sflag, size = 0x4, scoped, tag = 'scoped memory for tpu_custom_call.1']
    #allocation13 [shape = 'u8[8192]{0}', space=vmem, size = 0x2000, scoped, tag = 'input window, operand 6, single buffered']
    #allocation14 [shape = 'u8[4096]{0}', space=vmem, size = 0x1000, scoped, tag = 'input window, operand 7, single buffered']
    #allocation15 [shape = 's32[1]{0}', space=sflag, size = 0x4, scoped, tag = 'scoped memory for tpu_custom_call.1']
    #allocation16 [shape = 'u8[8192]{0}', space=vmem, size = 0x2000, scoped, tag = 'output window, operand 0, single buffered']
    %13 = vsyncpa [#allocation3], 0
    %14 = vsyncpa [#allocation6], 0
    %15 = vsyncpa [#allocation9], 0
    %16 = vsyncpa [#allocation12], 0
    %17 = vsyncpa [#allocation15], 0
    %18 = vsyncpa [#allocation4], 0
    // Predicated region
    $region2: #{tpu_custom_call.1} parent=1 // pred_check
      _
    $region3: #{tpu_custom_call.1} parent=1 // pred_check_branch
      %20 = sbr.rel (0) target = $region5
    $region4: #{tpu_custom_call.1} parent=1 // pred_region
      %22 = vsyncadd [#allocation3], 0
      %s24 = sshll.u32 %s0, 4
      %s25 = int_to_ptr.hbm [resolvable:$true] %s24
      %s26 = sshll.u32 [#allocation2], 4
      %s27 = int_to_ptr.vmem [resolvable:$true] %s26
      %29 = dma.hbm_to_vmem [thread:$0]  %s25, 128, %s27, [#allocation3]
    $region5: #{tpu_custom_call.1} parent=1 // pred_fallthru
      _
    // Predicated region
    $region6: #{tpu_custom_call.1} parent=1 // pred_check
      _
    $region7: #{tpu_custom_call.1} parent=1 // pred_check_branch
      %31 = sbr.rel (0) target = $region9
    $region8: #{tpu_custom_call.1} parent=1 // pred_region
      %33 = vsyncadd [#allocation6], 0
      %s35 = sshll.u32 %s1, 4
      %s36 = int_to_ptr.hbm [resolvable:$true] %s35
      %s37 = sshll.u32 [#allocation5], 4
      %s38 = int_to_ptr.vmem [resolvable:$true] %s37
      %40 = dma.hbm_to_vmem [thread:$0]  %s36, 128, %s38, [#allocation6]
    $region9: #{tpu_custom_call.1} parent=1 // pred_fallthru
      _
    // Predicated region
    $region10: #{tpu_custom_call.1} parent=1 // pred_check
      _
    $region11: #{tpu_custom_call.1} parent=1 // pred_check_branch
      %42 = sbr.rel (0) target = $region13
    $region12: #{tpu_custom_call.1} parent=1 // pred_region
      %44 = vsyncadd [#allocation6], 0
      %s46 = sshll.u32 %s2, 4
      %s47 = int_to_ptr.hbm [resolvable:$true] %s46
      %s48 = sshll.u32 [#allocation7], 4
      %s49 = int_to_ptr.vmem [resolvable:$true] %s48
      %51 = dma.hbm_to_vmem [thread:$0]  %s47, 32, %s49, [#allocation6]
    $region13: #{tpu_custom_call.1} parent=1 // pred_fallthru
      _
    // Predicated region
    $region14: #{tpu_custom_call.1} parent=1 // pred_check
      _
    $region15: #{tpu_custom_call.1} parent=1 // pred_check_branch
      %53 = sbr.rel (0) target = $region17
    $region16: #{tpu_custom_call.1} parent=1 // pred_region
      %55 = vsyncadd [#allocation9], 0
      %s56 = sshll.u32 %s3, 4
      %s57 = int_to_ptr.hbm [resolvable:$true] %s56
      %s58 = sshll.u32 [#allocation8], 4
      %s59 = int_to_ptr.vmem [resolvable:$true] %s58
      %64 = dma.hbm_to_vmem [thread:$0]  %s57, 256, %s59, [#allocation9], 64, 64, 4
    $region17: #{tpu_custom_call.1} parent=1 // pred_fallthru
      _
    // Predicated region
    $region18: #{tpu_custom_call.1} parent=1 // pred_check
      _
    $region19: #{tpu_custom_call.1} parent=1 // pred_check_branch
      %66 = sbr.rel (0) target = $region21
    $region20: #{tpu_custom_call.1} parent=1 // pred_region
      %68 = vsyncadd [#allocation9], 0
      %s70 = sshll.u32 %s4, 4
      %s71 = int_to_ptr.hbm [resolvable:$true] %s70
      %s72 = sshll.u32 [#allocation10], 4
      %s73 = int_to_ptr.vmem [resolvable:$true] %s72
      %75 = dma.hbm_to_vmem [thread:$0]  %s71, 128, %s73, [#allocation9]
    $region21: #{tpu_custom_call.1} parent=1 // pred_fallthru
      _
    // Predicated region
    $region22: #{tpu_custom_call.1} parent=1 // pred_check
      _
    $region23: #{tpu_custom_call.1} parent=1 // pred_check_branch
      %77 = sbr.rel (0) target = $region25
    $region24: #{tpu_custom_call.1} parent=1 // pred_region
      %79 = vsyncadd [#allocation12], 0
      %s80 = sshll.u32 %s5, 4
      %s81 = int_to_ptr.hbm [resolvable:$true] %s80
      %s82 = sshll.u32 [#allocation11], 4
      %s83 = int_to_ptr.vmem [resolvable:$true] %s82
      %88 = dma.hbm_to_vmem [thread:$0]  %s81, 256, %s83, [#allocation12], 64, 64, 4
    $region25: #{tpu_custom_call.1} parent=1 // pred_fallthru
      _
    // Predicated region
    $region26: #{tpu_custom_call.1} parent=1 // pred_check
      _
    $region27: #{tpu_custom_call.1} parent=1 // pred_check_branch
      %90 = sbr.rel (0) target = $region29
    $region28: #{tpu_custom_call.1} parent=1 // pred_region
      %92 = vsyncadd [#allocation12], 0
      %s93 = sshll.u32 %s6, 4
      %s94 = int_to_ptr.hbm [resolvable:$true] %s93
      %s95 = sshll.u32 [#allocation13], 4
      %s96 = int_to_ptr.vmem [resolvable:$true] %s95
      %101 = dma.hbm_to_vmem [thread:$0]  %s94, 256, %s96, [#allocation12], 64, 64, 4
    $region29: #{tpu_custom_call.1} parent=1 // pred_fallthru
      _
    // Predicated region
    $region30: #{tpu_custom_call.1} parent=1 // pred_check
      _
    $region31: #{tpu_custom_call.1} parent=1 // pred_check_branch
      %103 = sbr.rel (0) target = $region33
    $region32: #{tpu_custom_call.1} parent=1 // pred_region
      %105 = vsyncadd [#allocation15], 0
      %s107 = sshll.u32 %s7, 4
      %s108 = int_to_ptr.hbm [resolvable:$true] %s107
      %s109 = sshll.u32 [#allocation14], 4
      %s110 = int_to_ptr.vmem [resolvable:$true] %s109
      %112 = dma.hbm_to_vmem [thread:$0]  %s108, 128, %s110, [#allocation15]
    $region33: #{tpu_custom_call.1} parent=1 // pred_fallthru
      _
    // Predicated region
    $region34: #{tpu_custom_call.1} parent=1 // pred_check
      _
    $region35: #{tpu_custom_call.1} parent=1 // pred_check_branch
      %114 = sbr.rel (0) target = $region37
    $region36: #{tpu_custom_call.1} parent=1 // pred_region
      %116 = dma.done [#allocation3], 128
    $region37: #{tpu_custom_call.1} parent=1 // pred_fallthru
      _
    // Predicated region
    $region38: #{tpu_custom_call.1} parent=1 // pred_check
      _
    $region39: #{tpu_custom_call.1} parent=1 // pred_check_branch
      %118 = sbr.rel (0) target = $region41
    $region40: #{tpu_custom_call.1} parent=1 // pred_region
      %120 = dma.done [#allocation6], 128
    $region41: #{tpu_custom_call.1} parent=1 // pred_fallthru
      _
    // Predicated region
    $region42: #{tpu_custom_call.1} parent=1 // pred_check
      _
    $region43: #{tpu_custom_call.1} parent=1 // pred_check_branch
      %122 = sbr.rel (0) target = $region45
    $region44: #{tpu_custom_call.1} parent=1 // pred_region
      %124 = dma.done [#allocation6], 32
    $region45: #{tpu_custom_call.1} parent=1 // pred_fallthru
      _
    // Predicated region
    $region46: #{tpu_custom_call.1} parent=1 // pred_check
      _
    $region47: #{tpu_custom_call.1} parent=1 // pred_check_branch
      %126 = sbr.rel (0) target = $region49
    $region48: #{tpu_custom_call.1} parent=1 // pred_region
      %128 = dma.done [#allocation9], 256
    $region49: #{tpu_custom_call.1} parent=1 // pred_fallthru
      _
    // Predicated region
    $region50: #{tpu_custom_call.1} parent=1 // pred_check
      _
    $region51: #{tpu_custom_call.1} parent=1 // pred_check_branch
      %130 = sbr.rel (0) target = $region53
    $region52: #{tpu_custom_call.1} parent=1 // pred_region
      %132 = dma.done [#allocation9], 128
    $region53: #{tpu_custom_call.1} parent=1 // pred_fallthru
      _
    // Predicated region
    $region54: #{tpu_custom_call.1} parent=1 // pred_check
      _
    $region55: #{tpu_custom_call.1} parent=1 // pred_check_branch
      %134 = sbr.rel (0) target = $region57
    $region56: #{tpu_custom_call.1} parent=1 // pred_region
      %136 = dma.done [#allocation12], 256
    $region57: #{tpu_custom_call.1} parent=1 // pred_fallthru
      _
    // Predicated region
    $region58: #{tpu_custom_call.1} parent=1 // pred_check
      _
    $region59: #{tpu_custom_call.1} parent=1 // pred_check_branch
      %138 = sbr.rel (0) target = $region61
    $region60: #{tpu_custom_call.1} parent=1 // pred_region
      %140 = dma.done [#allocation12], 256
    $region61: #{tpu_custom_call.1} parent=1 // pred_fallthru
      _
    // Predicated region
    $region62: #{tpu_custom_call.1} parent=1 // pred_check
      _
    $region63: #{tpu_custom_call.1} parent=1 // pred_check_branch
      %142 = sbr.rel (0) target = $region65
    $region64: #{tpu_custom_call.1} parent=1 // pred_region
      %144 = dma.done [#allocation15], 128
    $region65: #{tpu_custom_call.1} parent=1 // pred_fallthru
      _
    %v146 = vld [vmem:[#allocation5] sm:$0xff]
    %vm147 = vcmask 64512
    %v148 = vsel %vm147, %v146, 0.0
    %149 = vadd.xlane.f32.xlu0 %v148
    %v150 = vpop.xlane.xlu0 %149
    %v151 = vmax.f32 %v150, 1.0
    %v152 = vrcp.pop %v151
    %v153 = vmul.f32 %v151, %v152
    %v154 = vsub.f32 1.0, %v153
    %v155 = vmul.f32 %v152, %v154
    %v156 = vadd.f32 %v152, %v155
    %vm157 = vweird.f32 %v151
    %vm158 = vweird.f32 %v152
    %vm159 = vmor %vm157, %vm158
    %v160 = vsel %vm159, %v152, %v156
    %v161 = vand.u32 2147483647, %v151
    %vm162 = vcmp.eq.f32.partialorder %v161, 8.507059e+37
    %v163 = vand.u32 %v151, 2147483648
    %v164 = vor.u32 1.1754944e-38, %v163
    %v165 = vsel %vm162, %v164, %v160
    %v166 = vmul.f32 1.0, %v165
    %v167 = vperm.slane %v146, 0
    %v168 = vlaneseq
    %v169 = vshrl.u32 %v168, 7
    %171 = vset.pattern.permute.xlu0 %v169
    %172 = vperm.xlu0 %171, %v167
    %v173 = vpop.permute.xlu0 %172
    %v174 = vperm.slane %v146, 1
    %v175 = vlaneseq
    %v176 = vshrl.u32 %v175, 7
    %178 = vset.pattern.permute.xlu0 %v176
    %179 = vperm.xlu0 %178, %v174
    %v180 = vpop.permute.xlu0 %179
    %v181 = vperm.slane %v146, 2
    %v182 = vlaneseq
    %v183 = vshrl.u32 %v182, 7
    %185 = vset.pattern.permute.xlu0 %v183
    %186 = vperm.xlu0 %185, %v181
    %v187 = vpop.permute.xlu0 %186
    %v188 = vperm.slane %v146, 3
    %v189 = vlaneseq
    %v190 = vshrl.u32 %v189, 7
    %192 = vset.pattern.permute.xlu0 %v190
    %193 = vperm.xlu0 %192, %v188
    %v194 = vpop.permute.xlu0 %193
    %v195 = vperm.slane %v146, 4
    %v196 = vlaneseq
    %v197 = vshrl.u32 %v196, 7
    %199 = vset.pattern.permute.xlu0 %v197
    %200 = vperm.xlu0 %199, %v195
    %v201 = vpop.permute.xlu0 %200
    %v202 = vperm.slane %v146, 5
    %v203 = vlaneseq
    %v204 = vshrl.u32 %v203, 7
    %206 = vset.pattern.permute.xlu0 %v204
    %207 = vperm.xlu0 %206, %v202
    %v208 = vpop.permute.xlu0 %207
    %v209 = vperm.slane %v146, 6
    %v210 = vlaneseq
    %v211 = vshrl.u32 %v210, 7
    %213 = vset.pattern.permute.xlu0 %v211
    %214 = vperm.xlu0 %213, %v209
    %v215 = vpop.permute.xlu0 %214
    %v216 = vperm.slane %v146, 7
    %v217 = vlaneseq
    %v218 = vshrl.u32 %v217, 7
    %220 = vset.pattern.permute.xlu0 %v218
    %221 = vperm.xlu0 %220, %v216
    %v222 = vpop.permute.xlu0 %221
    %v223 = vld [vmem:[#allocation2] sm:$0xff]
    %225 = vrot.lane.b32.xlu0 %v223, 124
    %v226 = vpop.permute.xlu0 %225
    %228 = vrot.lane.b32.xlu0 %v223, 120
    %v229 = vpop.permute.xlu0 %228
    %231 = vrot.lane.b32.xlu0 %v223, 116
    %v232 = vpop.permute.xlu0 %231
    %234 = vrot.lane.b32.xlu0 %v223, 112
    %v235 = vpop.permute.xlu0 %234
    %237 = vrot.lane.b32.xlu0 %v223, 108
    %v238 = vpop.permute.xlu0 %237
    %240 = vrot.lane.b32.xlu0 %v223, 104
    %v241 = vpop.permute.xlu0 %240
    %243 = vrot.lane.b32.xlu0 %v223, 100
    %v244 = vpop.permute.xlu0 %243
    %v246 = vrot.slane %v229, 4
    %vm247 = vcmask 1047556
    %v248 = vsel %vm247, %v246, %v223
    %v249 = vrot.slane %v223, 4
    %v250 = vsel %vm247, %v229, %v249
    %v252 = vunpack.c.l.s4 1983009808
    %v253 = vunpack.c.0.s8 %v252
    %v254 = vperm.slane %v248, %v253
    %v256 = vunpack.c.l.s4 1983009808
    %v257 = vunpack.c.0.s8 %v256
    %v258 = vperm.slane %v250, %v257
    %v259 = vrot.slane %v232, 4
    %v260 = vsel %vm247, %v259, %v226
    %v261 = vrot.slane %v226, 4
    %v262 = vsel %vm247, %v232, %v261
    %v264 = vunpack.c.l.s4 1983009808
    %v265 = vunpack.c.0.s8 %v264
    %v266 = vperm.slane %v260, %v265
    %v268 = vunpack.c.l.s4 1983009808
    %v269 = vunpack.c.0.s8 %v268
    %v270 = vperm.slane %v262, %v269
    %v271 = vrot.slane %v241, 4
    %v272 = vsel %vm247, %v271, %v235
    %v273 = vrot.slane %v235, 4
    %v274 = vsel %vm247, %v241, %v273
    %v276 = vunpack.c.l.s4 1983009808
    %v277 = vunpack.c.0.s8 %v276
    %v278 = vperm.slane %v272, %v277
    %v280 = vunpack.c.l.s4 1983009808
    %v281 = vunpack.c.0.s8 %v280
    %v282 = vperm.slane %v274, %v281
    %v283 = vrot.slane %v244, 4
    %v284 = vsel %vm247, %v283, %v238
    %v285 = vrot.slane %v238, 4
    %v286 = vsel %vm247, %v244, %v285
    %v288 = vunpack.c.l.s4 1983009808
    %v289 = vunpack.c.0.s8 %v288
    %v290 = vperm.slane %v284, %v289
    %v292 = vunpack.c.l.s4 1983009808
    %v293 = vunpack.c.0.s8 %v292
    %v294 = vperm.slane %v286, %v293
    %v295 = vrot.slane %v266, 4
    %v296 = vsel %vm247, %v295, %v254
    %v297 = vrot.slane %v254, 4
    %v298 = vsel %vm247, %v266, %v297
    %v300 = vunpack.c.l.s4 1934713408
    %v301 = vunpack.c.0.s8 %v300
    %v302 = vperm.slane %v296, %v301
    %v304 = vunpack.c.l.s4 1934713408
    %v305 = vunpack.c.0.s8 %v304
    %v306 = vperm.slane %v298, %v305
    %v307 = vrot.slane %v270, 4
    %v308 = vsel %vm247, %v307, %v258
    %v309 = vrot.slane %v258, 4
    %v310 = vsel %vm247, %v270, %v309
    %v312 = vunpack.c.l.s4 1934713408
    %v313 = vunpack.c.0.s8 %v312
    %v314 = vperm.slane %v308, %v313
    %v316 = vunpack.c.l.s4 1934713408
    %v317 = vunpack.c.0.s8 %v316
    %v318 = vperm.slane %v310, %v317
    %v319 = vrot.slane %v290, 4
    %v320 = vsel %vm247, %v319, %v278
    %v321 = vrot.slane %v278, 4
    %v322 = vsel %vm247, %v290, %v321
    %v324 = vunpack.c.l.s4 1934713408
    %v325 = vunpack.c.0.s8 %v324
    %v326 = vperm.slane %v320, %v325
    %v328 = vunpack.c.l.s4 1934713408
    %v329 = vunpack.c.0.s8 %v328
    %v330 = vperm.slane %v322, %v329
    %v331 = vrot.slane %v294, 4
    %v332 = vsel %vm247, %v331, %v282
    %v333 = vrot.slane %v282, 4
    %v334 = vsel %vm247, %v294, %v333
    %v336 = vunpack.c.l.s4 1934713408
    %v337 = vunpack.c.0.s8 %v336
    %v338 = vperm.slane %v332, %v337
    %v340 = vunpack.c.l.s4 1934713408
    %v341 = vunpack.c.0.s8 %v340
    %v342 = vperm.slane %v334, %v341
    %v343 = vrot.slane %v326, 4
    %v344 = vsel %vm247, %v343, %v302
    %v345 = vrot.slane %v302, 4
    %v346 = vsel %vm247, %v326, %v345
    %v347 = vrot.slane %v330, 4
    %v348 = vsel %vm247, %v347, %v306
    %v349 = vrot.slane %v306, 4
    %v350 = vsel %vm247, %v330, %v349
    %v351 = vrot.slane %v338, 4
    %v352 = vsel %vm247, %v351, %v314
    %v353 = vrot.slane %v314, 4
    %v354 = vsel %vm247, %v338, %v353
    %v355 = vrot.slane %v342, 4
    %v356 = vsel %vm247, %v355, %v318
    %v357 = vrot.slane %v318, 4
    %v358 = vsel %vm247, %v342, %v357
    %v359 = vmul.f32 %v344, %v173
    %v360 = vmul.f32 %v346, %v180
    %v361 = vmul.f32 %v348, %v187
    %v362 = vmul.f32 %v350, %v194
    %v363 = vmul.f32 %v352, %v201
    %v364 = vmul.f32 %v354, %v208
    %v365 = vmul.f32 %v356, %v215
    %v366 = vmul.f32 %v358, %v222
    %v367 = vpack.c.bf16 %v360, %v359
    %v368 = vpack.c.bf16 %v362, %v361
    %v369 = vpack.c.bf16 %v364, %v363
    %v370 = vpack.c.bf16 %v366, %v365
    %v371 = vld [vmem:[#allocation7] sm:$0x3]
    %vm372 = vcmask 31744
    %v374 = vsel %vm372, %v367, 0
    %v377 = vsel %vm372, %v368, 0
    %v380 = vsel %vm372, %v369, 0
    %v383 = vsel %vm372, %v370, 0
    %vm385 = vcmask 1041408
    %v387 = vsel %vm385, %v371, 0
    %389 = vmatpush.bf16.msra.mxu0 0
    %390 = vmatpush.bf16.msra.mxu0 0
    %391 = vmatpush.bf16.msra.mxu0 0
    %392 = vmatpush.bf16.msra.mxu0 0
    %393 = vmatpush.bf16.msra.mxu0 0
    %394 = vmatpush.bf16.msra.mxu0 0
    %395 = vmatpush.bf16.msra.mxu0 0
    %396 = vmatpush.bf16.msra.mxu0 %v387
    %397 = vmatmul.bf16.gmra.mxu0 %v374
    %v398 = vpop.f32.mrf.mxu0
    %v399 = vadd.f32 0.0, %v398
    %v400 = vpop.f32.mrf.mxu0
    %v401 = vadd.f32 0.0, %v400
    %402 = vmatmul.bf16.gmra.mxu0 %v377
    %v403 = vpop.f32.mrf.mxu0
    %v404 = vadd.f32 0.0, %v403
    %v405 = vpop.f32.mrf.mxu0
    %v406 = vadd.f32 0.0, %v405
    %407 = vmatmul.bf16.gmra.mxu0 %v380
    %v408 = vpop.f32.mrf.mxu0
    %v409 = vadd.f32 0.0, %v408
    %v410 = vpop.f32.mrf.mxu0
    %v411 = vadd.f32 0.0, %v410
    %412 = vmatmul.bf16.gmra.mxu0 %v383
    %v413 = vpop.f32.mrf.mxu0
    %v414 = vadd.f32 0.0, %v413
    %v415 = vpop.f32.mrf.mxu0
    %v416 = vadd.f32 0.0, %v415
    %417 = vdwg.mxu0
    %v418 = vld [vmem:[#allocation10] sm:$0xff]
    %v420 = vrot.slane %v418, 1
    %v421 = vrot.slane %v418, 2
    %v422 = vrot.slane %v418, 3
    %v423 = vrot.slane %v418, 4
    %v424 = vrot.slane %v418, 5
    %v425 = vrot.slane %v418, 6
    %v426 = vrot.slane %v418, 7
    %v427 = vperm.slane %v418, 0
    %v428 = vperm.slane %v420, 0
    %v429 = vperm.slane %v421, 0
    %v430 = vperm.slane %v422, 0
    %v431 = vperm.slane %v423, 0
    %v432 = vperm.slane %v424, 0
    %v433 = vperm.slane %v425, 0
    %v434 = vperm.slane %v426, 0
    %v443 = vadd.f32 %v399, %v427
    %v444 = vadd.f32 %v401, %v428
    %v445 = vadd.f32 %v404, %v429
    %v446 = vadd.f32 %v406, %v430
    %v447 = vadd.f32 %v409, %v431
    %v448 = vadd.f32 %v411, %v432
    %v449 = vadd.f32 %v414, %v433
    %v450 = vadd.f32 %v416, %v434
    %v451 = vmax.f32 %v443, 0.0
    %v452 = vmax.f32 %v444, 0.0
    %v453 = vmax.f32 %v445, 0.0
    %v454 = vmax.f32 %v446, 0.0
    %v455 = vmax.f32 %v447, 0.0
    %v456 = vmax.f32 %v448, 0.0
    %v457 = vmax.f32 %v449, 0.0
    %v458 = vmax.f32 %v450, 0.0
    %v459 = vmul.f32 %v451, %v173
    %v460 = vmul.f32 %v452, %v180
    %v461 = vmul.f32 %v453, %v187
    %v462 = vmul.f32 %v454, %v194
    %v463 = vmul.f32 %v455, %v201
    %v464 = vmul.f32 %v456, %v208
    %v465 = vmul.f32 %v457, %v215
    %v466 = vmul.f32 %v458, %v222
    %vm467 = vcmask 261120
    %v468 = vsel %vm467, %v459, 0.0
    %v469 = vrot.slane %v468, 4
    %v470 = vadd.f32 %v468, %v469
    %v471 = vrot.slane %v470, 2
    %v472 = vadd.f32 %v470, %v471
    %v473 = vrot.slane %v472, 1
    %v474 = vadd.f32 %v472, %v473
    %v475 = vsel %vm467, %v460, 0.0
    %v476 = vrot.slane %v475, 4
    %v477 = vadd.f32 %v475, %v476
    %v478 = vrot.slane %v477, 2
    %v479 = vadd.f32 %v477, %v478
    %v480 = vrot.slane %v479, 1
    %v481 = vadd.f32 %v479, %v480
    %v482 = vsel %vm467, %v461, 0.0
    %v483 = vrot.slane %v482, 4
    %v484 = vadd.f32 %v482, %v483
    %v485 = vrot.slane %v484, 2
    %v486 = vadd.f32 %v484, %v485
    %v487 = vrot.slane %v486, 1
    %v488 = vadd.f32 %v486, %v487
    %v489 = vsel %vm467, %v462, 0.0
    %v490 = vrot.slane %v489, 4
    %v491 = vadd.f32 %v489, %v490
    %v492 = vrot.slane %v491, 2
    %v493 = vadd.f32 %v491, %v492
    %v494 = vrot.slane %v493, 1
    %v495 = vadd.f32 %v493, %v494
    %v496 = vsel %vm467, %v463, 0.0
    %v497 = vrot.slane %v496, 4
    %v498 = vadd.f32 %v496, %v497
    %v499 = vrot.slane %v498, 2
    %v500 = vadd.f32 %v498, %v499
    %v501 = vrot.slane %v500, 1
    %v502 = vadd.f32 %v500, %v501
    %v503 = vsel %vm467, %v464, 0.0
    %v504 = vrot.slane %v503, 4
    %v505 = vadd.f32 %v503, %v504
    %v506 = vrot.slane %v505, 2
    %v507 = vadd.f32 %v505, %v506
    %v508 = vrot.slane %v507, 1
    %v509 = vadd.f32 %v507, %v508
    %v510 = vsel %vm467, %v465, 0.0
    %v511 = vrot.slane %v510, 4
    %v512 = vadd.f32 %v510, %v511
    %v513 = vrot.slane %v512, 2
    %v514 = vadd.f32 %v512, %v513
    %v515 = vrot.slane %v514, 1
    %v516 = vadd.f32 %v514, %v515
    %v517 = vsel %vm467, %v466, 0.0
    %v518 = vrot.slane %v517, 4
    %v519 = vadd.f32 %v517, %v518
    %v520 = vrot.slane %v519, 2
    %v521 = vadd.f32 %v519, %v520
    %v522 = vrot.slane %v521, 1
    %v523 = vadd.f32 %v521, %v522
    %v525 = vrot.slane %v166, 1
    %v526 = vrot.slane %v166, 2
    %v527 = vrot.slane %v166, 3
    %v528 = vrot.slane %v166, 4
    %v529 = vrot.slane %v166, 5
    %v530 = vrot.slane %v166, 6
    %v531 = vrot.slane %v166, 7
    %v540 = vmul.f32 %v474, %v166
    %v541 = vmul.f32 %v481, %v525
    %v542 = vmul.f32 %v488, %v526
    %v543 = vmul.f32 %v495, %v527
    %v544 = vmul.f32 %v502, %v528
    %v545 = vmul.f32 %v509, %v529
    %v546 = vmul.f32 %v516, %v530
    %v547 = vmul.f32 %v523, %v531
    %v548 = vpack.c.bf16 %v540, %v540
    %v549 = vpack.c.bf16 %v541, %v541
    %v550 = vpack.c.bf16 %v542, %v542
    %v551 = vpack.c.bf16 %v543, %v543
    %v552 = vpack.c.bf16 %v544, %v544
    %v553 = vpack.c.bf16 %v545, %v545
    %v554 = vpack.c.bf16 %v546, %v546
    %v555 = vpack.c.bf16 %v547, %v547
    %v556 = vld [vmem:[#allocation8] sm:$0xf]
    %v557 = vld [vmem:[#allocation8 + $0x4] sm:$0xf]
    %v558 = vld [vmem:[#allocation8 + $0x8] sm:$0xf]
    %v559 = vld [vmem:[#allocation8 + $0xc] sm:$0xf]
    %v568 = vunpack.c.l.b16 %v548
    %v569 = vunpack.c.l.b16 %v549
    %v570 = vunpack.c.l.b16 %v550
    %v571 = vunpack.c.l.b16 %v551
    %v572 = vunpack.c.l.b16 %v552
    %v573 = vunpack.c.l.b16 %v553
    %v574 = vunpack.c.l.b16 %v554
    %v575 = vunpack.c.l.b16 %v555
    %v576 = vrot.slane %v569, 7
    %vm577 = vcmask 1041409
    %v578 = vsel %vm577, %v576, %v568
    %v579 = vrot.slane %v570, 6
    %vm580 = vcmask 1042434
    %v581 = vsel %vm580, %v579, %v578
    %v582 = vrot.slane %v571, 5
    %vm583 = vcmask 1043459
    %v584 = vsel %vm583, %v582, %v581
    %v585 = vrot.slane %v572, 4
    %vm586 = vcmask 1044484
    %v587 = vsel %vm586, %v585, %v584
    %v588 = vrot.slane %v573, 3
    %vm589 = vcmask 1045509
    %v590 = vsel %vm589, %v588, %v587
    %v591 = vrot.slane %v574, 2
    %vm592 = vcmask 1046534
    %v593 = vsel %vm592, %v591, %v590
    %v594 = vrot.slane %v575, 1
    %vm595 = vcmask 1047559
    %v596 = vsel %vm595, %v594, %v593
    %v597 = vpack.c.b16 %v596, %v596
    %v602 = vunpack.c.l.b16 %v556
    %v603 = vunpack.c.l.b16 %v557
    %v604 = vunpack.c.l.b16 %v558
    %v605 = vunpack.c.l.b16 %v559
    %v606 = vpack.c.b16 %v603, %v602
    %v607 = vpack.c.b16 %v605, %v604
    %v611 = vsel %vm467, %v597, 0
    %613 = vmatpush.bf16.msra.mxu0 0
    %614 = vmatpush.bf16.msra.mxu0 0
    %615 = vmatpush.bf16.msra.mxu0 0
    %616 = vmatpush.bf16.msra.mxu0 0
    %617 = vmatpush.bf16.msra.mxu0 0
    %618 = vmatpush.bf16.msra.mxu0 0
    %619 = vmatpush.bf16.msra.mxu0 %v607
    %620 = vmatpush.bf16.msra.mxu0 %v606
    %621 = vmatmul.bf16.gmra.mxu0 %v611
    %v622 = vpop.f32.mrf.mxu0
    %v623 = vadd.f32 0.0, %v622
    %v624 = vpop.f32.mrf.mxu0
    %625 = vdwg.mxu0
    %v627 = vrot.slane %v623, 1
    %v628 = vrot.slane %v623, 2
    %v629 = vrot.slane %v623, 3
    %v630 = vrot.slane %v623, 4
    %v631 = vrot.slane %v623, 5
    %v632 = vrot.slane %v623, 6
    %v633 = vrot.slane %v623, 7
    %v634 = vperm.slane %v623, 0
    %v635 = vperm.slane %v627, 0
    %v636 = vperm.slane %v628, 0
    %v637 = vperm.slane %v629, 0
    %v638 = vperm.slane %v630, 0
    %v639 = vperm.slane %v631, 0
    %v640 = vperm.slane %v632, 0
    %v641 = vperm.slane %v633, 0
    %642 = vrot.lane.b32.xlu0 %v634, 32
    %v643 = vpop.permute.xlu0 %642
    %644 = vrot.lane.b32.xlu0 %v635, 32
    %v645 = vpop.permute.xlu0 %644
    %646 = vrot.lane.b32.xlu0 %v636, 32
    %v647 = vpop.permute.xlu0 %646
    %648 = vrot.lane.b32.xlu0 %v637, 32
    %v649 = vpop.permute.xlu0 %648
    %650 = vrot.lane.b32.xlu0 %v638, 32
    %v651 = vpop.permute.xlu0 %650
    %652 = vrot.lane.b32.xlu0 %v639, 32
    %v653 = vpop.permute.xlu0 %652
    %654 = vrot.lane.b32.xlu0 %v640, 32
    %v655 = vpop.permute.xlu0 %654
    %656 = vrot.lane.b32.xlu0 %v641, 32
    %v657 = vpop.permute.xlu0 %656
    %v666 = vadd.f32 %v443, %v643
    %v667 = vadd.f32 %v444, %v645
    %v668 = vadd.f32 %v445, %v647
    %v669 = vadd.f32 %v446, %v649
    %v670 = vadd.f32 %v447, %v651
    %v671 = vadd.f32 %v448, %v653
    %v672 = vadd.f32 %v449, %v655
    %v673 = vadd.f32 %v450, %v657
    %v674 = vmax.f32 %v666, 0.0
    %v675 = vmax.f32 %v667, 0.0
    %v676 = vmax.f32 %v668, 0.0
    %v677 = vmax.f32 %v669, 0.0
    %v678 = vmax.f32 %v670, 0.0
    %v679 = vmax.f32 %v671, 0.0
    %v680 = vmax.f32 %v672, 0.0
    %v681 = vmax.f32 %v673, 0.0
    %v682 = vmul.f32 %v674, %v173
    %v683 = vmul.f32 %v675, %v180
    %v684 = vmul.f32 %v676, %v187
    %v685 = vmul.f32 %v677, %v194
    %v686 = vmul.f32 %v678, %v201
    %v687 = vmul.f32 %v679, %v208
    %v688 = vmul.f32 %v680, %v215
    %v689 = vmul.f32 %v681, %v222
    %v690 = vpack.c.bf16 %v683, %v682
    %v691 = vpack.c.bf16 %v685, %v684
    %v692 = vpack.c.bf16 %v687, %v686
    %v693 = vpack.c.bf16 %v689, %v688
    %v694 = vld [vmem:[#allocation11] sm:$0xf]
    %v695 = vld [vmem:[#allocation11 + $0x4] sm:$0xf]
    %v696 = vld [vmem:[#allocation11 + $0x8] sm:$0xf]
    %v697 = vld [vmem:[#allocation11 + $0xc] sm:$0xf]
    %702 = vrot.lane.b32.xlu0 %v690, 96
    %v703 = vpop.permute.xlu0 %702
    %704 = vrot.lane.b32.xlu0 %v691, 96
    %v705 = vpop.permute.xlu0 %704
    %706 = vrot.lane.b32.xlu0 %v692, 96
    %v707 = vpop.permute.xlu0 %706
    %708 = vrot.lane.b32.xlu0 %v693, 96
    %v709 = vpop.permute.xlu0 %708
    %v714 = vunpack.c.l.b16 %v694
    %v715 = vunpack.c.l.b16 %v695
    %v716 = vunpack.c.l.b16 %v696
    %v717 = vunpack.c.l.b16 %v697
    %v718 = vpack.c.b16 %v715, %v714
    %v719 = vpack.c.b16 %v717, %v716
    %v723 = vsel %vm467, %v703, 0
    %v726 = vsel %vm467, %v705, 0
    %v729 = vsel %vm467, %v707, 0
    %v732 = vsel %vm467, %v709, 0
    %734 = vmatpush.bf16.msra.mxu0 0
    %735 = vmatpush.bf16.msra.mxu0 0
    %736 = vmatpush.bf16.msra.mxu0 0
    %737 = vmatpush.bf16.msra.mxu0 0
    %738 = vmatpush.bf16.msra.mxu0 0
    %739 = vmatpush.bf16.msra.mxu0 0
    %740 = vmatpush.bf16.msra.mxu0 %v719
    %741 = vmatpush.bf16.msra.mxu0 %v718
    %742 = vmatmul.bf16.gmra.mxu0 %v723
    %v743 = vpop.f32.mrf.mxu0
    %v744 = vadd.f32 0.0, %v743
    %v745 = vpop.f32.mrf.mxu0
    %v746 = vadd.f32 0.0, %v745
    %747 = vmatmul.bf16.gmra.mxu0 %v726
    %v748 = vpop.f32.mrf.mxu0
    %v749 = vadd.f32 0.0, %v748
    %v750 = vpop.f32.mrf.mxu0
    %v751 = vadd.f32 0.0, %v750
    %752 = vmatmul.bf16.gmra.mxu0 %v729
    %v753 = vpop.f32.mrf.mxu0
    %v754 = vadd.f32 0.0, %v753
    %v755 = vpop.f32.mrf.mxu0
    %v756 = vadd.f32 0.0, %v755
    %757 = vmatmul.bf16.gmra.mxu0 %v732
    %v758 = vpop.f32.mrf.mxu0
    %v759 = vadd.f32 0.0, %v758
    %v760 = vpop.f32.mrf.mxu0
    %v761 = vadd.f32 0.0, %v760
    %762 = vdwg.mxu0
    %v763 = vld [vmem:[#allocation14] sm:$0xff]
    %v765 = vrot.slane %v763, 1
    %v766 = vrot.slane %v763, 2
    %v767 = vrot.slane %v763, 3
    %v768 = vrot.slane %v763, 4
    %v769 = vrot.slane %v763, 5
    %v770 = vrot.slane %v763, 6
    %v771 = vrot.slane %v763, 7
    %v772 = vperm.slane %v763, 0
    %v773 = vperm.slane %v765, 0
    %v774 = vperm.slane %v766, 0
    %v775 = vperm.slane %v767, 0
    %v776 = vperm.slane %v768, 0
    %v777 = vperm.slane %v769, 0
    %v778 = vperm.slane %v770, 0
    %v779 = vperm.slane %v771, 0
    %v788 = vadd.f32 %v744, %v772
    %v789 = vadd.f32 %v746, %v773
    %v790 = vadd.f32 %v749, %v774
    %v791 = vadd.f32 %v751, %v775
    %v792 = vadd.f32 %v754, %v776
    %v793 = vadd.f32 %v756, %v777
    %v794 = vadd.f32 %v759, %v778
    %v795 = vadd.f32 %v761, %v779
    %v796 = vmax.f32 %v788, 0.0
    %v797 = vmax.f32 %v789, 0.0
    %v798 = vmax.f32 %v790, 0.0
    %v799 = vmax.f32 %v791, 0.0
    %v800 = vmax.f32 %v792, 0.0
    %v801 = vmax.f32 %v793, 0.0
    %v802 = vmax.f32 %v794, 0.0
    %v803 = vmax.f32 %v795, 0.0
    %v804 = vmul.f32 %v796, %v173
    %v805 = vmul.f32 %v797, %v180
    %v806 = vmul.f32 %v798, %v187
    %v807 = vmul.f32 %v799, %v194
    %v808 = vmul.f32 %v800, %v201
    %v809 = vmul.f32 %v801, %v208
    %v810 = vmul.f32 %v802, %v215
    %v811 = vmul.f32 %v803, %v222
    %v812 = vsel %vm467, %v804, 0.0
    %v813 = vrot.slane %v812, 4
    %v814 = vadd.f32 %v812, %v813
    %v815 = vrot.slane %v814, 2
    %v816 = vadd.f32 %v814, %v815
    %v817 = vrot.slane %v816, 1
    %v818 = vadd.f32 %v816, %v817
    %v819 = vsel %vm467, %v805, 0.0
    %v820 = vrot.slane %v819, 4
    %v821 = vadd.f32 %v819, %v820
    %v822 = vrot.slane %v821, 2
    %v823 = vadd.f32 %v821, %v822
    %v824 = vrot.slane %v823, 1
    %v825 = vadd.f32 %v823, %v824
    %v826 = vsel %vm467, %v806, 0.0
    %v827 = vrot.slane %v826, 4
    %v828 = vadd.f32 %v826, %v827
    %v829 = vrot.slane %v828, 2
    %v830 = vadd.f32 %v828, %v829
    %v831 = vrot.slane %v830, 1
    %v832 = vadd.f32 %v830, %v831
    %v833 = vsel %vm467, %v807, 0.0
    %v834 = vrot.slane %v833, 4
    %v835 = vadd.f32 %v833, %v834
    %v836 = vrot.slane %v835, 2
    %v837 = vadd.f32 %v835, %v836
    %v838 = vrot.slane %v837, 1
    %v839 = vadd.f32 %v837, %v838
    %v840 = vsel %vm467, %v808, 0.0
    %v841 = vrot.slane %v840, 4
    %v842 = vadd.f32 %v840, %v841
    %v843 = vrot.slane %v842, 2
    %v844 = vadd.f32 %v842, %v843
    %v845 = vrot.slane %v844, 1
    %v846 = vadd.f32 %v844, %v845
    %v847 = vsel %vm467, %v809, 0.0
    %v848 = vrot.slane %v847, 4
    %v849 = vadd.f32 %v847, %v848
    %v850 = vrot.slane %v849, 2
    %v851 = vadd.f32 %v849, %v850
    %v852 = vrot.slane %v851, 1
    %v853 = vadd.f32 %v851, %v852
    %v854 = vsel %vm467, %v810, 0.0
    %v855 = vrot.slane %v854, 4
    %v856 = vadd.f32 %v854, %v855
    %v857 = vrot.slane %v856, 2
    %v858 = vadd.f32 %v856, %v857
    %v859 = vrot.slane %v858, 1
    %v860 = vadd.f32 %v858, %v859
    %v861 = vsel %vm467, %v811, 0.0
    %v862 = vrot.slane %v861, 4
    %v863 = vadd.f32 %v861, %v862
    %v864 = vrot.slane %v863, 2
    %v865 = vadd.f32 %v863, %v864
    %v866 = vrot.slane %v865, 1
    %v867 = vadd.f32 %v865, %v866
    %v868 = vmul.f32 %v818, %v166
    %v869 = vmul.f32 %v825, %v525
    %v870 = vmul.f32 %v832, %v526
    %v871 = vmul.f32 %v839, %v527
    %v872 = vmul.f32 %v846, %v528
    %v873 = vmul.f32 %v853, %v529
    %v874 = vmul.f32 %v860, %v530
    %v875 = vmul.f32 %v867, %v531
    %v876 = vpack.c.bf16 %v868, %v868
    %v877 = vpack.c.bf16 %v869, %v869
    %v878 = vpack.c.bf16 %v870, %v870
    %v879 = vpack.c.bf16 %v871, %v871
    %v880 = vpack.c.bf16 %v872, %v872
    %v881 = vpack.c.bf16 %v873, %v873
    %v882 = vpack.c.bf16 %v874, %v874
    %v883 = vpack.c.bf16 %v875, %v875
    %v884 = vld [vmem:[#allocation13] sm:$0xf]
    %v885 = vld [vmem:[#allocation13 + $0x4] sm:$0xf]
    %v886 = vld [vmem:[#allocation13 + $0x8] sm:$0xf]
    %v887 = vld [vmem:[#allocation13 + $0xc] sm:$0xf]
    %v896 = vunpack.c.l.b16 %v876
    %v897 = vunpack.c.l.b16 %v877
    %v898 = vunpack.c.l.b16 %v878
    %v899 = vunpack.c.l.b16 %v879
    %v900 = vunpack.c.l.b16 %v880
    %v901 = vunpack.c.l.b16 %v881
    %v902 = vunpack.c.l.b16 %v882
    %v903 = vunpack.c.l.b16 %v883
    %v904 = vrot.slane %v897, 7
    %v905 = vsel %vm577, %v904, %v896
    %v906 = vrot.slane %v898, 6
    %v907 = vsel %vm580, %v906, %v905
    %v908 = vrot.slane %v899, 5
    %v909 = vsel %vm583, %v908, %v907
    %v910 = vrot.slane %v900, 4
    %v911 = vsel %vm586, %v910, %v909
    %v912 = vrot.slane %v901, 3
    %v913 = vsel %vm589, %v912, %v911
    %v914 = vrot.slane %v902, 2
    %v915 = vsel %vm592, %v914, %v913
    %v916 = vrot.slane %v903, 1
    %v917 = vsel %vm595, %v916, %v915
    %v918 = vpack.c.b16 %v917, %v917
    %v923 = vunpack.c.l.b16 %v884
    %v924 = vunpack.c.l.b16 %v885
    %v925 = vunpack.c.l.b16 %v886
    %v926 = vunpack.c.l.b16 %v887
    %v927 = vpack.c.b16 %v924, %v923
    %v928 = vpack.c.b16 %v926, %v925
    %v932 = vsel %vm467, %v918, 0
    %934 = vmatpush.bf16.msra.mxu0 0
    %935 = vmatpush.bf16.msra.mxu0 0
    %936 = vmatpush.bf16.msra.mxu0 0
    %937 = vmatpush.bf16.msra.mxu0 0
    %938 = vmatpush.bf16.msra.mxu0 0
    %939 = vmatpush.bf16.msra.mxu0 0
    %940 = vmatpush.bf16.msra.mxu0 %v928
    %941 = vmatpush.bf16.msra.mxu0 %v927
    %942 = vmatmul.bf16.gmra.mxu0 %v932
    %v943 = vpop.f32.mrf.mxu0
    %v944 = vadd.f32 0.0, %v943
    %v945 = vpop.f32.mrf.mxu0
    %946 = vdwg.mxu0
    %v948 = vrot.slane %v944, 1
    %v949 = vrot.slane %v944, 2
    %v950 = vrot.slane %v944, 3
    %v951 = vrot.slane %v944, 4
    %v952 = vrot.slane %v944, 5
    %v953 = vrot.slane %v944, 6
    %v954 = vrot.slane %v944, 7
    %v955 = vperm.slane %v944, 0
    %v956 = vperm.slane %v948, 0
    %v957 = vperm.slane %v949, 0
    %v958 = vperm.slane %v950, 0
    %v959 = vperm.slane %v951, 0
    %v960 = vperm.slane %v952, 0
    %v961 = vperm.slane %v953, 0
    %v962 = vperm.slane %v954, 0
    %963 = vrot.lane.b32.xlu0 %v955, 32
    %v964 = vpop.permute.xlu0 %963
    %965 = vrot.lane.b32.xlu0 %v956, 32
    %v966 = vpop.permute.xlu0 %965
    %967 = vrot.lane.b32.xlu0 %v957, 32
    %v968 = vpop.permute.xlu0 %967
    %969 = vrot.lane.b32.xlu0 %v958, 32
    %v970 = vpop.permute.xlu0 %969
    %971 = vrot.lane.b32.xlu0 %v959, 32
    %v972 = vpop.permute.xlu0 %971
    %973 = vrot.lane.b32.xlu0 %v960, 32
    %v974 = vpop.permute.xlu0 %973
    %975 = vrot.lane.b32.xlu0 %v961, 32
    %v976 = vpop.permute.xlu0 %975
    %977 = vrot.lane.b32.xlu0 %v962, 32
    %v978 = vpop.permute.xlu0 %977
    %v987 = vadd.f32 %v788, %v964
    %v988 = vadd.f32 %v789, %v966
    %v989 = vadd.f32 %v790, %v968
    %v990 = vadd.f32 %v791, %v970
    %v991 = vadd.f32 %v792, %v972
    %v992 = vadd.f32 %v793, %v974
    %v993 = vadd.f32 %v794, %v976
    %v994 = vadd.f32 %v795, %v978
    %v995 = vmax.f32 %v987, 0.0
    %v996 = vmax.f32 %v988, 0.0
    %v997 = vmax.f32 %v989, 0.0
    %v998 = vmax.f32 %v990, 0.0
    %v999 = vmax.f32 %v991, 0.0
    %v1000 = vmax.f32 %v992, 0.0
    %v1001 = vmax.f32 %v993, 0.0
    %v1002 = vmax.f32 %v994, 0.0
    %v1003 = vmul.f32 %v995, %v173
    %v1004 = vmul.f32 %v996, %v180
    %v1005 = vmul.f32 %v997, %v187
    %v1006 = vmul.f32 %v998, %v194
    %v1007 = vmul.f32 %v999, %v201
    %v1008 = vmul.f32 %v1000, %v208
    %v1009 = vmul.f32 %v1001, %v215
    %v1010 = vmul.f32 %v1002, %v222
    %1019 = vrot.lane.b32.xlu0 %v1003, 96
    %v1020 = vpop.permute.xlu0 %1019
    %1021 = vrot.lane.b32.xlu0 %v1004, 96
    %v1022 = vpop.permute.xlu0 %1021
    %1023 = vrot.lane.b32.xlu0 %v1005, 96
    %v1024 = vpop.permute.xlu0 %1023
    %1025 = vrot.lane.b32.xlu0 %v1006, 96
    %v1026 = vpop.permute.xlu0 %1025
    %1027 = vrot.lane.b32.xlu0 %v1007, 96
    %v1028 = vpop.permute.xlu0 %1027
    %1029 = vrot.lane.b32.xlu0 %v1008, 96
    %v1030 = vpop.permute.xlu0 %1029
    %1031 = vrot.lane.b32.xlu0 %v1009, 96
    %v1032 = vpop.permute.xlu0 %1031
    %1033 = vrot.lane.b32.xlu0 %v1010, 96
    %v1034 = vpop.permute.xlu0 %1033
    %v1043 = vrot.slane %v1024, 4
    %v1044 = vsel %vm247, %v1043, %v1020
    %v1045 = vrot.slane %v1020, 4
    %v1046 = vsel %vm247, %v1024, %v1045
    %v1048 = vunpack.c.l.s4 1983009808
    %v1049 = vunpack.c.0.s8 %v1048
    %v1050 = vperm.slane %v1044, %v1049
    %v1052 = vunpack.c.l.s4 1983009808
    %v1053 = vunpack.c.0.s8 %v1052
    %v1054 = vperm.slane %v1046, %v1053
    %v1055 = vrot.slane %v1026, 4
    %v1056 = vsel %vm247, %v1055, %v1022
    %v1057 = vrot.slane %v1022, 4
    %v1058 = vsel %vm247, %v1026, %v1057
    %v1060 = vunpack.c.l.s4 1983009808
    %v1061 = vunpack.c.0.s8 %v1060
    %v1062 = vperm.slane %v1056, %v1061
    %v1064 = vunpack.c.l.s4 1983009808
    %v1065 = vunpack.c.0.s8 %v1064
    %v1066 = vperm.slane %v1058, %v1065
    %v1067 = vrot.slane %v1032, 4
    %v1068 = vsel %vm247, %v1067, %v1028
    %v1069 = vrot.slane %v1028, 4
    %v1070 = vsel %vm247, %v1032, %v1069
    %v1072 = vunpack.c.l.s4 1983009808
    %v1073 = vunpack.c.0.s8 %v1072
    %v1074 = vperm.slane %v1068, %v1073
    %v1076 = vunpack.c.l.s4 1983009808
    %v1077 = vunpack.c.0.s8 %v1076
    %v1078 = vperm.slane %v1070, %v1077
    %v1079 = vrot.slane %v1034, 4
    %v1080 = vsel %vm247, %v1079, %v1030
    %v1081 = vrot.slane %v1030, 4
    %v1082 = vsel %vm247, %v1034, %v1081
    %v1084 = vunpack.c.l.s4 1983009808
    %v1085 = vunpack.c.0.s8 %v1084
    %v1086 = vperm.slane %v1080, %v1085
    %v1088 = vunpack.c.l.s4 1983009808
    %v1089 = vunpack.c.0.s8 %v1088
    %v1090 = vperm.slane %v1082, %v1089
    %v1091 = vrot.slane %v1062, 4
    %v1092 = vsel %vm247, %v1091, %v1050
    %v1093 = vrot.slane %v1050, 4
    %v1094 = vsel %vm247, %v1062, %v1093
    %v1096 = vunpack.c.l.s4 1934713408
    %v1097 = vunpack.c.0.s8 %v1096
    %v1098 = vperm.slane %v1092, %v1097
    %v1100 = vunpack.c.l.s4 1934713408
    %v1101 = vunpack.c.0.s8 %v1100
    %v1102 = vperm.slane %v1094, %v1101
    %v1103 = vrot.slane %v1066, 4
    %v1104 = vsel %vm247, %v1103, %v1054
    %v1105 = vrot.slane %v1054, 4
    %v1106 = vsel %vm247, %v1066, %v1105
    %v1108 = vunpack.c.l.s4 1934713408
    %v1109 = vunpack.c.0.s8 %v1108
    %v1110 = vperm.slane %v1104, %v1109
    %v1112 = vunpack.c.l.s4 1934713408
    %v1113 = vunpack.c.0.s8 %v1112
    %v1114 = vperm.slane %v1106, %v1113
    %v1115 = vrot.slane %v1086, 4
    %v1116 = vsel %vm247, %v1115, %v1074
    %v1117 = vrot.slane %v1074, 4
    %v1118 = vsel %vm247, %v1086, %v1117
    %v1120 = vunpack.c.l.s4 1934713408
    %v1121 = vunpack.c.0.s8 %v1120
    %v1122 = vperm.slane %v1116, %v1121
    %v1124 = vunpack.c.l.s4 1934713408
    %v1125 = vunpack.c.0.s8 %v1124
    %v1126 = vperm.slane %v1118, %v1125
    %v1127 = vrot.slane %v1090, 4
    %v1128 = vsel %vm247, %v1127, %v1078
    %v1129 = vrot.slane %v1078, 4
    %v1130 = vsel %vm247, %v1090, %v1129
    %v1132 = vunpack.c.l.s4 1934713408
    %v1133 = vunpack.c.0.s8 %v1132
    %v1134 = vperm.slane %v1128, %v1133
    %v1136 = vunpack.c.l.s4 1934713408
    %v1137 = vunpack.c.0.s8 %v1136
    %v1138 = vperm.slane %v1130, %v1137
    %v1139 = vrot.slane %v1122, 4
    %v1140 = vsel %vm247, %v1139, %v1098
    %v1141 = vrot.slane %v1098, 4
    %v1142 = vsel %vm247, %v1122, %v1141
    %v1143 = vrot.slane %v1126, 4
    %v1144 = vsel %vm247, %v1143, %v1102
    %v1145 = vrot.slane %v1102, 4
    %v1146 = vsel %vm247, %v1126, %v1145
    %v1147 = vrot.slane %v1134, 4
    %v1148 = vsel %vm247, %v1147, %v1110
    %v1149 = vrot.slane %v1110, 4
    %v1150 = vsel %vm247, %v1134, %v1149
    %v1151 = vrot.slane %v1138, 4
    %v1152 = vsel %vm247, %v1151, %v1114
    %v1153 = vrot.slane %v1114, 4
    %v1154 = vsel %vm247, %v1138, %v1153
    %1156 = vrot.lane.b32.xlu0 %v1142, 32
    %v1157 = vpop.permute.xlu0 %1156
    %1160 = vrot.lane.b32.xlu0 %v1144, 64
    %v1161 = vpop.permute.xlu0 %1160
    %1164 = vrot.lane.b32.xlu0 %v1146, 96
    %v1165 = vpop.permute.xlu0 %1164
    %1168 = vrot.lane.b32.xlu0 %v1150, 32
    %v1169 = vpop.permute.xlu0 %1168
    %1172 = vrot.lane.b32.xlu0 %v1152, 64
    %v1173 = vpop.permute.xlu0 %1172
    %1176 = vrot.lane.b32.xlu0 %v1154, 96
    %v1177 = vpop.permute.xlu0 %1176
    %v1179 = vsel %vm467, %v1140, %v1157
    %vm1180 = vcmask 523264
    %v1181 = vsel %vm1180, %v1179, %v1161
    %vm1182 = vcmask 785408
    %v1183 = vsel %vm1182, %v1181, %v1165
    %v1184 = vsel %vm467, %v1148, %v1169
    %v1185 = vsel %vm1180, %v1184, %v1173
    %v1186 = vsel %vm1182, %v1185, %v1177
    %1187 = vst [vmem:[#allocation16] sm:$0xff] %v1183
    %1188 = vst [vmem:[#allocation16 + $0x8] sm:$0xff] %v1186
    // Predicated region
    $region66: #{tpu_custom_call.1} parent=1 // pred_check
      _
    $region67: #{tpu_custom_call.1} parent=1 // pred_check_branch
      %1190 = sbr.rel (0) target = $region69
    $region68: #{tpu_custom_call.1} parent=1 // pred_region
      %1192 = vsyncadd [#allocation4], 0
      %s1194 = sshll.u32 [#allocation16], 4
      %s1195 = int_to_ptr.vmem [resolvable:$true] %s1194
      %s1196 = sshll.u32 %s8, 4
      %s1197 = int_to_ptr.hbm [resolvable:$true] %s1196
      %1199 = dma.vmem_to_hbm [thread:$0]  %s1195, 256, %s1197, [#allocation4]
    $region69: #{tpu_custom_call.1} parent=1 // pred_fallthru
      _
    // Predicated region
    $region70: #{tpu_custom_call.1} parent=1 // pred_check
      _
    $region71: #{tpu_custom_call.1} parent=1 // pred_check_branch
      %1201 = sbr.rel (0) target = $region73
    $region72: #{tpu_custom_call.1} parent=1 // pred_region
      %1203 = dma.done [#allocation4], 256
    $region73: #{tpu_custom_call.1} parent=1 // pred_fallthru
      _
    %1204 = vsyncpa [#allocation3], 1
    %1205 = vsyncpa [#allocation6], 1
    %1206 = vsyncpa [#allocation9], 1
    %1207 = vsyncpa [#allocation12], 1
    %1208 = vsyncpa [#allocation15], 1
    %1209 = vsyncpa [#allocation4], 1

</llo_original>
